<compile_context>
chip_gen: v6e
topology: v6e:2x2x1
jax: 0.10.0
libtpu: 0.0.40
codegen_flags: <defaults>
</compile_context>

<pallas_src>
import math

import jax
import jax.numpy as jnp
from jax.experimental import pallas as pl
from jax.experimental.pallas import tpu as pltpu


def _data_embedding_kernel(xs_ref, xe_ref, xc_ref,
                           ws_ref, we_ref, wc_ref,
                           bs_ref, be_ref, bc_ref,
                           pe_ref,
                           os_ref, oe_ref, oc_ref):
    """Fused circular conv1d(k=3) + bias + positional embedding for 3 streams.

    x*_ref : (B, L, C_i)   input features
    w*_ref : (3*C_i, D)    conv taps stacked row-wise: [W_prev; W_curr; W_next]
    b*_ref : (1, D)        conv bias
    pe_ref : (L, D)        positional encoding (already sliced to seq length)
    o*_ref : (B, L, D)     outputs
    """
    pe = pe_ref[...]                                           # (L, D), loaded once

    def embed(x_ref, w_ref, b_ref, o_ref):
        x = x_ref[...]                                         # (B, L, C)
        B, L, C = x.shape
        D = w_ref.shape[-1]
        # Circular shifts on the whole block (once, not per batch element).
        x_prev = jnp.roll(x, 1, axis=1)                        # x[(t-1) % L]
        x_next = jnp.roll(x, -1, axis=1)                       # x[(t+1) % L]
        # Collapse the 3 taps and the batch dim into one MXU matmul:
        #   (B*L, 3C) @ (3C, D)
        x3 = jnp.concatenate([x_prev, x, x_next], axis=-1)     # (B, L, 3C)
        acc = jnp.dot(x3.reshape(B * L, 3 * C), w_ref[...],
                      preferred_element_type=jnp.float32)      # (B*L, D)
        bpe = b_ref[...] + pe                                  # (L, D), hoisted bias+PE
        o_ref[...] = (acc.reshape(B, L, D) + bpe[None]).astype(o_ref.dtype)

    embed(xs_ref, ws_ref, bs_ref, os_ref)
    embed(xe_ref, we_ref, be_ref, oe_ref)
    embed(xc_ref, wc_ref, bc_ref, oc_ref)


def data_embedding_pallas(sales, epidemic, covariate, params):
    """Single fused pallas_call computing all three token+positional embeddings."""
    B, L, _ = sales.shape
    D = params["pe"].shape[-1]
    pe = params["pe"][:L]
    ws, bs = params["sales"]
    we, be = params["epidemic"]
    wc, bc = params["covariate"]

    out_sd = jax.ShapeDtypeStruct((B, L, D), jnp.float32)
    vmem_spec = pl.BlockSpec(memory_space=pltpu.MemorySpace.VMEM)

    flops = 2 * B * L * D * (ws.shape[0] + we.shape[0] + wc.shape[0])
    in_elems = (sales.size + epidemic.size + covariate.size
                + ws.size + we.size + wc.size
                + bs.size + be.size + bc.size + pe.size)
    bytes_accessed = 4 * (in_elems + 3 * B * L * D)

    return pl.pallas_call(
        _data_embedding_kernel,
        out_shape=(out_sd, out_sd, out_sd),
        in_specs=[vmem_spec] * 10,
        out_specs=(vmem_spec, vmem_spec, vmem_spec),
        cost_estimate=pl.CostEstimate(flops=flops, transcendentals=0,
                                      bytes_accessed=bytes_accessed),
    )(sales, epidemic, covariate, ws, we, wc, bs, be, bc, pe)


@jax.jit
def data_embedding_forward(params, sales, epidemic, predictable, unpredictable):
    covariate = jnp.concatenate([predictable, unpredictable], axis=-1)
    return data_embedding_pallas(sales, epidemic, covariate, params)


# ----------------------------- parameter setup (glue, plain JAX) --------------

def positional_encoding(d_model, max_len=100):
    position = jnp.arange(max_len, dtype=jnp.float32)[:, None]            # (max_len, 1)
    div_term = jnp.exp(jnp.arange(0, d_model, 2, dtype=jnp.float32)
                       * -(math.log(10000.0) / d_model))                  # (d_model//2,)
    ang = position * div_term                                             # (max_len, d//2)
    # interleave sin/cos: pe[:, 0::2] = sin, pe[:, 1::2] = cos
    return jnp.stack([jnp.sin(ang), jnp.cos(ang)], axis=-1).reshape(max_len, d_model)


def init_token_conv(key, c_in, d_model):
    """Synthetic init mimicking kaiming_normal_(fan_in, leaky_relu) + Conv1d bias.

    Returns W3 of shape (3*c_in, d_model) with row blocks
      [0:C]   -> tap for x[t-1]   (== torch_weight[:, :, 0].T)
      [C:2C]  -> tap for x[t]     (== torch_weight[:, :, 1].T)
      [2C:3C] -> tap for x[t+1]   (== torch_weight[:, :, 2].T)
    """
    kw, kb = jax.random.split(key)
    fan_in = c_in * 3
    gain = math.sqrt(2.0 / (1.0 + 0.01 ** 2))
    std = gain / math.sqrt(fan_in)
    w = jax.random.normal(kw, (3, c_in, d_model), jnp.float32) * std
    w3 = w.reshape(3 * c_in, d_model)
    bound = 1.0 / math.sqrt(fan_in)
    b = jax.random.uniform(kb, (1, d_model), jnp.float32, -bound, bound)
    return w3, b


# ----------------------------- reference (pure JAX) ----------------------------

def _ref_token_embed(x, w3, b, pe):
    x3 = jnp.concatenate([jnp.roll(x, 1, axis=1), x, jnp.roll(x, -1, axis=1)], axis=-1)
    return x3 @ w3 + b[None] + pe[None]


if __name__ == "__main__":
    key = jax.random.PRNGKey(0)
    cfg = dict(sales_features=4, epidemic_features=3,
               predictable_features=2, unpredictable_features=3,
               atte_out_dim=32)
    B, L, D = 2, 8, cfg["atte_out_dim"]

    k_in, k_s, k_e, k_c = jax.random.split(key, 4)
    ks1, ks2, ks3, ks4 = jax.random.split(k_in, 4)
    sales = jax.random.normal(ks1, (B, L, cfg["sales_features"]), jnp.float32)
    epidemic = jax.random.normal(ks2, (B, L, cfg["epidemic_features"]), jnp.float32)
    predictable = jax.random.normal(ks3, (B, L, cfg["predictable_features"]), jnp.float32)
    unpredictable = jax.random.normal(ks4, (B, L, cfg["unpredictable_features"]), jnp.float32)

    params = {
        "sales": init_token_conv(k_s, cfg["sales_features"], D),
        "epidemic": init_token_conv(k_e, cfg["epidemic_features"], D),
        "covariate": init_token_conv(
            k_c, cfg["predictable_features"] + cfg["unpredictable_features"], D),
        "pe": positional_encoding(D, max_len=100),
    }

    outs = data_embedding_forward(params, sales, epidemic, predictable, unpredictable)
    outs = jax.block_until_ready(outs)

    # correctness check against pure-JAX reference
    pe = params["pe"][:L]
    covariate = jnp.concatenate([predictable, unpredictable], axis=-1)
    refs = (
        _ref_token_embed(sales, *params["sales"], pe),
        _ref_token_embed(epidemic, *params["epidemic"], pe),
        _ref_token_embed(covariate, *params["covariate"], pe),
    )
    for got, want in zip(outs, refs):
        assert got.shape == (B, L, D) and got.dtype == jnp.float32
        err = float(jnp.max(jnp.abs(got - want)))
        assert jnp.allclose(got, want, rtol=2e-5, atol=2e-5), err

    print("KERNEL_OK")
</pallas_src>

<mosaic_0001>
module attributes {stable_mosaic.version = 11 : i64} {
  func.func @_data_embedding_kernel(%arg0: memref<2x8x4xf32, #tpu.memory_space<vmem>>, %arg1: memref<2x8x3xf32, #tpu.memory_space<vmem>>, %arg2: memref<2x8x5xf32, #tpu.memory_space<vmem>>, %arg3: memref<12x32xf32, #tpu.memory_space<vmem>>, %arg4: memref<9x32xf32, #tpu.memory_space<vmem>>, %arg5: memref<15x32xf32, #tpu.memory_space<vmem>>, %arg6: memref<1x32xf32, #tpu.memory_space<vmem>>, %arg7: memref<1x32xf32, #tpu.memory_space<vmem>>, %arg8: memref<1x32xf32, #tpu.memory_space<vmem>>, %arg9: memref<8x32xf32, #tpu.memory_space<vmem>>, %arg10: memref<2x8x32xf32, #tpu.memory_space<vmem>>, %arg11: memref<2x8x32xf32, #tpu.memory_space<vmem>>, %arg12: memref<2x8x32xf32, #tpu.memory_space<vmem>>) attributes {dimension_semantics = [], scalar_prefetch = 0 : i64, scratch_operands = 0 : i64, tpu.core_type = #tpu.core_type<tc>} {
    %c0 = arith.constant 0 : index
    %c0_0 = arith.constant 0 : index
    %0 = vector.load %arg9[%c0, %c0_0] : memref<8x32xf32, #tpu.memory_space<vmem>>, vector<8x32xf32>
    %c0_1 = arith.constant 0 : index
    %c0_2 = arith.constant 0 : index
    %c0_3 = arith.constant 0 : index
    %1 = vector.load %arg0[%c0_1, %c0_2, %c0_3] : memref<2x8x4xf32, #tpu.memory_space<vmem>>, vector<2x8x4xf32>
    %2 = vector.extract_strided_slice %1 {offsets = [0, 7, 0], sizes = [2, 1, 4], strides = [1, 1, 1]} : vector<2x8x4xf32> to vector<2x1x4xf32>
    %3 = vector.extract_strided_slice %1 {offsets = [0, 0, 0], sizes = [2, 7, 4], strides = [1, 1, 1]} : vector<2x8x4xf32> to vector<2x7x4xf32>
    %4 = tpu.concatenate %2, %3 in 1 : vector<2x1x4xf32>, vector<2x7x4xf32> -> vector<2x8x4xf32>
    %5 = vector.extract_strided_slice %1 {offsets = [0, 1, 0], sizes = [2, 7, 4], strides = [1, 1, 1]} : vector<2x8x4xf32> to vector<2x7x4xf32>
    %6 = vector.extract_strided_slice %1 {offsets = [0, 0, 0], sizes = [2, 1, 4], strides = [1, 1, 1]} : vector<2x8x4xf32> to vector<2x1x4xf32>
    %7 = tpu.concatenate %5, %6 in 1 : vector<2x7x4xf32>, vector<2x1x4xf32> -> vector<2x8x4xf32>
    %8 = tpu.concatenate %4, %1, %7 in 2 : vector<2x8x4xf32>, vector<2x8x4xf32>, vector<2x8x4xf32> -> vector<2x8x12xf32>
    %9 = vector.shape_cast %8 : vector<2x8x12xf32> to vector<16x12xf32>
    %c0_4 = arith.constant 0 : index
    %c0_5 = arith.constant 0 : index
    %10 = vector.load %arg3[%c0_4, %c0_5] : memref<12x32xf32, #tpu.memory_space<vmem>>, vector<12x32xf32>
    %cst = arith.constant dense<0.000000e+00> : vector<16x32xf32>
    %11 = tpu.matmul %9, %10, %cst {dimension_numbers = #tpu.dot_dimension_numbers<[1], [0], [0], [1], [0, 0, 1, 1], [], []>} : vector<16x12xf32>, vector<12x32xf32>, vector<16x32xf32> -> vector<16x32xf32>
    %c0_6 = arith.constant 0 : index
    %c0_7 = arith.constant 0 : index
    %12 = vector.load %arg6[%c0_6, %c0_7] : memref<1x32xf32, #tpu.memory_space<vmem>>, vector<1x32xf32>
    %13 = vector.broadcast %12 : vector<1x32xf32> to vector<8x32xf32>
    %14 = arith.addf %13, %0 : vector<8x32xf32>
    %15 = vector.shape_cast %11 : vector<16x32xf32> to vector<2x8x32xf32>
    %16 = vector.shape_cast %14 : vector<8x32xf32> to vector<1x8x32xf32>
    %17 = vector.broadcast %16 : vector<1x8x32xf32> to vector<2x8x32xf32>
    %18 = arith.addf %15, %17 : vector<2x8x32xf32>
    %c0_8 = arith.constant 0 : index
    %c0_9 = arith.constant 0 : index
    %c0_10 = arith.constant 0 : index
    %19 = vector.load %arg10[%c0_8, %c0_9, %c0_10] : memref<2x8x32xf32, #tpu.memory_space<vmem>>, vector<2x8x32xf32>
    tpu.vector_store %arg10[%c0_8, %c0_9, %c0_10], %18 {strides = array<i32>} : memref<2x8x32xf32, #tpu.memory_space<vmem>>, vector<2x8x32xf32>,
    %c0_11 = arith.constant 0 : index
    %c0_12 = arith.constant 0 : index
    %c0_13 = arith.constant 0 : index
    %20 = vector.load %arg1[%c0_11, %c0_12, %c0_13] : memref<2x8x3xf32, #tpu.memory_space<vmem>>, vector<2x8x3xf32>
    %21 = vector.extract_strided_slice %20 {offsets = [0, 7, 0], sizes = [2, 1, 3], strides = [1, 1, 1]} : vector<2x8x3xf32> to vector<2x1x3xf32>
    %22 = vector.extract_strided_slice %20 {offsets = [0, 0, 0], sizes = [2, 7, 3], strides = [1, 1, 1]} : vector<2x8x3xf32> to vector<2x7x3xf32>
    %23 = tpu.concatenate %21, %22 in 1 : vector<2x1x3xf32>, vector<2x7x3xf32> -> vector<2x8x3xf32>
    %24 = vector.extract_strided_slice %20 {offsets = [0, 1, 0], sizes = [2, 7, 3], strides = [1, 1, 1]} : vector<2x8x3xf32> to vector<2x7x3xf32>
    %25 = vector.extract_strided_slice %20 {offsets = [0, 0, 0], sizes = [2, 1, 3], strides = [1, 1, 1]} : vector<2x8x3xf32> to vector<2x1x3xf32>
    %26 = tpu.concatenate %24, %25 in 1 : vector<2x7x3xf32>, vector<2x1x3xf32> -> vector<2x8x3xf32>
    %27 = tpu.concatenate %23, %20, %26 in 2 : vector<2x8x3xf32>, vector<2x8x3xf32>, vector<2x8x3xf32> -> vector<2x8x9xf32>
    %28 = vector.shape_cast %27 : vector<2x8x9xf32> to vector<16x9xf32>
    %c0_14 = arith.constant 0 : index
    %c0_15 = arith.constant 0 : index
    %29 = vector.load %arg4[%c0_14, %c0_15] : memref<9x32xf32, #tpu.memory_space<vmem>>, vector<9x32xf32>
    %cst_16 = arith.constant dense<0.000000e+00> : vector<16x32xf32>
    %30 = tpu.matmul %28, %29, %cst_16 {dimension_numbers = #tpu.dot_dimension_numbers<[1], [0], [0], [1], [0, 0, 1, 1], [], []>} : vector<16x9xf32>, vector<9x32xf32>, vector<16x32xf32> -> vector<16x32xf32>
    %c0_17 = arith.constant 0 : index
    %c0_18 = arith.constant 0 : index
    %31 = vector.load %arg7[%c0_17, %c0_18] : memref<1x32xf32, #tpu.memory_space<vmem>>, vector<1x32xf32>
    %32 = vector.broadcast %31 : vector<1x32xf32> to vector<8x32xf32>
    %33 = arith.addf %32, %0 : vector<8x32xf32>
    %34 = vector.shape_cast %30 : vector<16x32xf32> to vector<2x8x32xf32>
    %35 = vector.shape_cast %33 : vector<8x32xf32> to vector<1x8x32xf32>
    %36 = vector.broadcast %35 : vector<1x8x32xf32> to vector<2x8x32xf32>
    %37 = arith.addf %34, %36 : vector<2x8x32xf32>
    %c0_19 = arith.constant 0 : index
    %c0_20 = arith.constant 0 : index
    %c0_21 = arith.constant 0 : index
    %38 = vector.load %arg11[%c0_19, %c0_20, %c0_21] : memref<2x8x32xf32, #tpu.memory_space<vmem>>, vector<2x8x32xf32>
    tpu.vector_store %arg11[%c0_19, %c0_20, %c0_21], %37 {strides = array<i32>} : memref<2x8x32xf32, #tpu.memory_space<vmem>>, vector<2x8x32xf32>,
    %c0_22 = arith.constant 0 : index
    %c0_23 = arith.constant 0 : index
    %c0_24 = arith.constant 0 : index
    %39 = vector.load %arg2[%c0_22, %c0_23, %c0_24] : memref<2x8x5xf32, #tpu.memory_space<vmem>>, vector<2x8x5xf32>
    %40 = vector.extract_strided_slice %39 {offsets = [0, 7, 0], sizes = [2, 1, 5], strides = [1, 1, 1]} : vector<2x8x5xf32> to vector<2x1x5xf32>
    %41 = vector.extract_strided_slice %39 {offsets = [0, 0, 0], sizes = [2, 7, 5], strides = [1, 1, 1]} : vector<2x8x5xf32> to vector<2x7x5xf32>
    %42 = tpu.concatenate %40, %41 in 1 : vector<2x1x5xf32>, vector<2x7x5xf32> -> vector<2x8x5xf32>
    %43 = vector.extract_strided_slice %39 {offsets = [0, 1, 0], sizes = [2, 7, 5], strides = [1, 1, 1]} : vector<2x8x5xf32> to vector<2x7x5xf32>
    %44 = vector.extract_strided_slice %39 {offsets = [0, 0, 0], sizes = [2, 1, 5], strides = [1, 1, 1]} : vector<2x8x5xf32> to vector<2x1x5xf32>
    %45 = tpu.concatenate %43, %44 in 1 : vector<2x7x5xf32>, vector<2x1x5xf32> -> vector<2x8x5xf32>
    %46 = tpu.concatenate %42, %39, %45 in 2 : vector<2x8x5xf32>, vector<2x8x5xf32>, vector<2x8x5xf32> -> vector<2x8x15xf32>
    %47 = vector.shape_cast %46 : vector<2x8x15xf32> to vector<16x15xf32>
    %c0_25 = arith.constant 0 : index
    %c0_26 = arith.constant 0 : index
    %48 = vector.load %arg5[%c0_25, %c0_26] : memref<15x32xf32, #tpu.memory_space<vmem>>, vector<15x32xf32>
    %cst_27 = arith.constant dense<0.000000e+00> : vector<16x32xf32>
    %49 = tpu.matmul %47, %48, %cst_27 {dimension_numbers = #tpu.dot_dimension_numbers<[1], [0], [0], [1], [0, 0, 1, 1], [], []>} : vector<16x15xf32>, vector<15x32xf32>, vector<16x32xf32> -> vector<16x32xf32>
    %c0_28 = arith.constant 0 : index
    %c0_29 = arith.constant 0 : index
    %50 = vector.load %arg8[%c0_28, %c0_29] : memref<1x32xf32, #tpu.memory_space<vmem>>, vector<1x32xf32>
    %51 = vector.broadcast %50 : vector<1x32xf32> to vector<8x32xf32>
    %52 = arith.addf %51, %0 : vector<8x32xf32>
    %53 = vector.shape_cast %49 : vector<16x32xf32> to vector<2x8x32xf32>
    %54 = vector.shape_cast %52 : vector<8x32xf32> to vector<1x8x32xf32>
    %55 = vector.broadcast %54 : vector<1x8x32xf32> to vector<2x8x32xf32>
    %56 = arith.addf %53, %55 : vector<2x8x32xf32>
    %c0_30 = arith.constant 0 : index
    %c0_31 = arith.constant 0 : index
    %c0_32 = arith.constant 0 : index
    %57 = vector.load %arg12[%c0_30, %c0_31, %c0_32] : memref<2x8x32xf32, #tpu.memory_space<vmem>>, vector<2x8x32xf32>
    tpu.vector_store %arg12[%c0_30, %c0_31, %c0_32], %56 {strides = array<i32>} : memref<2x8x32xf32, #tpu.memory_space<vmem>>, vector<2x8x32xf32>,
    return
  }
}

</mosaic_0001>

<llo_original>
// kernel: data_embedding_forward.1
$region0: #{data_embedding_forward.1}
  #allocation0 [shape = 'u32[]', space=smem, size = 0x4, offset = 0x4, fixed_abs, tag = 'smem constant byte address 0x4 - core index']
  #allocation1 [shape = 'u32[144,128]{1,0:T(1,128)}', space=vmem, size = 0x12000, scoped, tag = 'internal scratch']
  %s0 = inlined_call_operand.vmem [shape: f32[2,8,4], index: 0, kind: input, shape index: {}]
  %s1 = inlined_call_operand.vmem [shape: f32[2,8,3], index: 1, kind: input, shape index: {}]
  %s2 = inlined_call_operand.vmem [shape: f32[2,8,5], index: 2, kind: input, shape index: {}]
  %s3 = inlined_call_operand.vmem [shape: f32[12,32], index: 3, kind: input, shape index: {}]
  %s4 = inlined_call_operand.vmem [shape: f32[9,32], index: 4, kind: input, shape index: {}]
  %s5 = inlined_call_operand.vmem [shape: f32[15,32], index: 5, kind: input, shape index: {}]
  %s6 = inlined_call_operand.vmem [shape: f32[1,32], index: 6, kind: input, shape index: {}]
  %s7 = inlined_call_operand.vmem [shape: f32[1,32], index: 7, kind: input, shape index: {}]
  %s8 = inlined_call_operand.vmem [shape: f32[1,32], index: 8, kind: input, shape index: {}]
  %s9 = inlined_call_operand.vmem [shape: f32[8,32], index: 9, kind: input, shape index: {}]
  %s10 = inlined_call_operand.hbm [shape: f32[2,8,32], index: 10, kind: output, shape index: {0}]
  %s11 = inlined_call_operand.hbm [shape: f32[2,8,32], index: 11, kind: output, shape index: {1}]
  %s12 = inlined_call_operand.hbm [shape: f32[2,8,32], index: 12, kind: output, shape index: {2}]
  %13 = xla_tuple %s10, %s11, %s12
  %s14 = sld [smem:[#allocation0]]
  $region66: #{data_embedding_forward.1} parent=0
    _
  %s16 = ssub.s32 1, %s14
  %s17 = scalar_select 0, %s16, %s14
  $region1: #{data_embedding_forward.1} parent=0
    #allocation2 [shape = 'u8[8192]{0}', space=vmem, size = 0x2000, scoped, tag = 'output window, operand 0, single buffered']
    #allocation3 [shape = 's32[1]{0}', space=sflag, size = 0x4, scoped, tag = 'scoped memory for data_embedding_forward.1']
    #allocation4 [shape = 'u8[8192]{0}', space=vmem, size = 0x2000, scoped, tag = 'output window, operand 1, single buffered']
    #allocation5 [shape = 's32[1]{0}', space=sflag, size = 0x4, scoped, tag = 'scoped memory for data_embedding_forward.1']
    #allocation6 [shape = 'u8[8192]{0}', space=vmem, size = 0x2000, scoped, tag = 'output window, operand 2, single buffered']
    %18 = vsyncpa [#allocation3], 0
    %19 = vsyncpa [#allocation5], 0
    // Predicated region
    $region2: #{data_embedding_forward.1} parent=1 // pred_check
      _
    $region3: #{data_embedding_forward.1} parent=1 // pred_check_branch
      %21 = sbr.rel (0) target = $region5
    $region4: #{data_embedding_forward.1} parent=1 // pred_region
      _
    $region5: #{data_embedding_forward.1} parent=1 // pred_fallthru
      _
    // Predicated region
    $region6: #{data_embedding_forward.1} parent=1 // pred_check
      _
    $region7: #{data_embedding_forward.1} parent=1 // pred_check_branch
      %23 = sbr.rel (0) target = $region9
    $region8: #{data_embedding_forward.1} parent=1 // pred_region
      _
    $region9: #{data_embedding_forward.1} parent=1 // pred_fallthru
      _
    // Predicated region
    $region10: #{data_embedding_forward.1} parent=1 // pred_check
      _
    $region11: #{data_embedding_forward.1} parent=1 // pred_check_branch
      %25 = sbr.rel (0) target = $region13
    $region12: #{data_embedding_forward.1} parent=1 // pred_region
      _
    $region13: #{data_embedding_forward.1} parent=1 // pred_fallthru
      _
    // Predicated region
    $region14: #{data_embedding_forward.1} parent=1 // pred_check
      _
    $region15: #{data_embedding_forward.1} parent=1 // pred_check_branch
      %27 = sbr.rel (0) target = $region17
    $region16: #{data_embedding_forward.1} parent=1 // pred_region
      _
    $region17: #{data_embedding_forward.1} parent=1 // pred_fallthru
      _
    // Predicated region
    $region18: #{data_embedding_forward.1} parent=1 // pred_check
      _
    $region19: #{data_embedding_forward.1} parent=1 // pred_check_branch
      %29 = sbr.rel (0) target = $region21
    $region20: #{data_embedding_forward.1} parent=1 // pred_region
      _
    $region21: #{data_embedding_forward.1} parent=1 // pred_fallthru
      _
    // Predicated region
    $region22: #{data_embedding_forward.1} parent=1 // pred_check
      _
    $region23: #{data_embedding_forward.1} parent=1 // pred_check_branch
      %31 = sbr.rel (0) target = $region25
    $region24: #{data_embedding_forward.1} parent=1 // pred_region
      _
    $region25: #{data_embedding_forward.1} parent=1 // pred_fallthru
      _
    // Predicated region
    $region26: #{data_embedding_forward.1} parent=1 // pred_check
      _
    $region27: #{data_embedding_forward.1} parent=1 // pred_check_branch
      %33 = sbr.rel (0) target = $region29
    $region28: #{data_embedding_forward.1} parent=1 // pred_region
      _
    $region29: #{data_embedding_forward.1} parent=1 // pred_fallthru
      _
    // Predicated region
    $region30: #{data_embedding_forward.1} parent=1 // pred_check
      _
    $region31: #{data_embedding_forward.1} parent=1 // pred_check_branch
      %35 = sbr.rel (0) target = $region33
    $region32: #{data_embedding_forward.1} parent=1 // pred_region
      _
    $region33: #{data_embedding_forward.1} parent=1 // pred_fallthru
      _
    // Predicated region
    $region34: #{data_embedding_forward.1} parent=1 // pred_check
      _
    $region35: #{data_embedding_forward.1} parent=1 // pred_check_branch
      %37 = sbr.rel (0) target = $region37
    $region36: #{data_embedding_forward.1} parent=1 // pred_region
      _
    $region37: #{data_embedding_forward.1} parent=1 // pred_fallthru
      _
    // Predicated region
    $region38: #{data_embedding_forward.1} parent=1 // pred_check
      _
    $region39: #{data_embedding_forward.1} parent=1 // pred_check_branch
      %39 = sbr.rel (0) target = $region41
    $region40: #{data_embedding_forward.1} parent=1 // pred_region
      _
    $region41: #{data_embedding_forward.1} parent=1 // pred_fallthru
      _
    %v40 = vld [vmem:[%s9] sm:$0xff]
    %v41 = vld [vmem:[%s0] sm:$0xff]
    %v42 = vld [vmem:[%s0 + $0x8] sm:$0xff]
    %v45 = vrot.slane %v41, 7
    %v46 = vrot.slane %v42, 7
    %vm49 = vcmask 1040384
    %v50 = vsel %vm49, %v45, %v45
    %v51 = vsel %vm49, %v46, %v46
    %v52 = vrot.slane %v41, 1
    %v53 = vrot.slane %v42, 1
    %vm56 = vcmask 1046528
    %v57 = vsel %vm56, %v52, %v52
    %v58 = vsel %vm56, %v53, %v53
    %59 = vrot.lane.b32.xlu0 %v41, 4
    %v60 = vpop.permute.xlu0 %59
    %61 = vrot.lane.b32.xlu0 %v42, 4
    %v62 = vpop.permute.xlu0 %61
    %67 = vrot.lane.b32.xlu0 %v57, 8
    %v68 = vpop.permute.xlu0 %67
    %69 = vrot.lane.b32.xlu0 %v58, 8
    %v70 = vpop.permute.xlu0 %69
    %vm73 = vcmask 31744
    %v74 = vsel %vm73, %v50, %v60
    %v75 = vsel %vm73, %v51, %v62
    %vm76 = vcmask 64512
    %v77 = vsel %vm76, %v74, %v68
    %v78 = vsel %vm76, %v75, %v70
    %v79 = vld [vmem:[%s3] sm:$0xff]
    %v80 = vld [vmem:[%s3 + $0x8] sm:$0xf]
    %vm81 = vcmask 97280
    %v83 = vsel %vm81, %v77, 0
    %v86 = vsel %vm81, %v78, 0
    %vm88 = vcmask 1043456
    %v90 = vsel %vm88, %v80, 0
    %92 = vmatprep.subr.mxu0 0.0
    %93 = vmatpush1.msra.mxu0 0.0
    %94 = vmatprep.subr.mxu0 0.0
    %95 = vmatpush1.msra.mxu0 0.0
    %96 = vmatprep.subr.mxu0 0.0
    %97 = vmatpush1.msra.mxu0 0.0
    %98 = vmatprep.subr.mxu0 0.0
    %99 = vmatpush1.msra.mxu0 0.0
    %100 = vmatprep.subr.mxu0 0.0
    %101 = vmatpush1.msra.mxu0 0.0
    %102 = vmatprep.subr.mxu0 0.0
    %103 = vmatpush1.msra.mxu0 0.0
    %104 = vmatprep.subr.mxu0 0.0
    %105 = vmatpush1.msra.mxu0 0.0
    %106 = vmatprep.subr.mxu0 0.0
    %107 = vmatpush1.msra.mxu0 0.0
    %108 = vmatprep.subr.mxu0 0.0
    %109 = vmatpush1.msra.mxu0 0.0
    %110 = vmatprep.subr.mxu0 0.0
    %111 = vmatpush1.msra.mxu0 0.0
    %112 = vmatprep.subr.mxu0 0.0
    %113 = vmatpush1.msra.mxu0 0.0
    %114 = vmatprep.subr.mxu0 0.0
    %115 = vmatpush1.msra.mxu0 0.0
    %116 = vmatprep.subr.mxu0 0.0
    %117 = vmatpush1.msra.mxu0 0.0
    %118 = vmatprep.subr.mxu0 0.0
    %119 = vmatpush1.msra.mxu0 0.0
    %120 = vmatprep.subr.mxu0 0.0
    %121 = vmatpush1.msra.mxu0 %v90
    %122 = vmatprep.subr.mxu0 0.0
    %123 = vmatpush1.msra.mxu0 %v79
    %124 = vmatprep.subr.mxu0 0.0
    %125 = vmatpush2.msra.mxu0 0.0
    %126 = vmatprep.subr.mxu0 0.0
    %127 = vmatpush2.msra.mxu0 0.0
    %128 = vmatprep.subr.mxu0 0.0
    %129 = vmatpush2.msra.mxu0 0.0
    %130 = vmatprep.subr.mxu0 0.0
    %131 = vmatpush2.msra.mxu0 0.0
    %132 = vmatprep.subr.mxu0 0.0
    %133 = vmatpush2.msra.mxu0 0.0
    %134 = vmatprep.subr.mxu0 0.0
    %135 = vmatpush2.msra.mxu0 0.0
    %136 = vmatprep.subr.mxu0 0.0
    %137 = vmatpush2.msra.mxu0 0.0
    %138 = vmatprep.subr.mxu0 0.0
    %139 = vmatpush2.msra.mxu0 0.0
    %140 = vmatprep.subr.mxu0 0.0
    %141 = vmatpush2.msra.mxu0 0.0
    %142 = vmatprep.subr.mxu0 0.0
    %143 = vmatpush2.msra.mxu0 0.0
    %144 = vmatprep.subr.mxu0 0.0
    %145 = vmatpush2.msra.mxu0 0.0
    %146 = vmatprep.subr.mxu0 0.0
    %147 = vmatpush2.msra.mxu0 0.0
    %148 = vmatprep.subr.mxu0 0.0
    %149 = vmatpush2.msra.mxu0 0.0
    %150 = vmatprep.subr.mxu0 0.0
    %151 = vmatpush2.msra.mxu0 0.0
    %152 = vmatprep.subr.mxu0 0.0
    %153 = vmatpush2.msra.mxu0 0.0
    %154 = vmatprep.subr.mxu0 0.0
    %155 = vmatpush2.msra.mxu0 0.0
    %156 = vmatprep.mubr.f32.mxu0 0.0
    %157 = vmatmul.mubr.f32.gmra.mxu0 %v83
    %v158 = vpop.f32.mrf.mxu0
    %v159 = vadd.f32 0.0, %v158
    %v160 = vpop.f32.mrf.mxu0
    %161 = vmatprep.mubr.f32.mxu0 0.0
    %162 = vmatmul.mubr.f32.gmra.mxu0 %v86
    %v163 = vpop.f32.mrf.mxu0
    %v164 = vadd.f32 0.0, %v163
    %v165 = vpop.f32.mrf.mxu0
    %166 = vdwg.mxu0
    %v167 = vld [vmem:[%s6] sm:$0x1]
    %v169 = vlaneseq
    %v170 = vshrl.u32 %v169, 7
    %v171 = vsub.s32 0, %v170
    %v172 = vrot.slane %v167, %v171
    %v174 = vadd.f32 %v172, %v40
    %v175 = vadd.f32 %v159, %v174
    %v176 = vadd.f32 %v164, %v174
    %vm177 = vcmask 261120
    %178 = vst.msk [vmem:[#allocation2] sm:$0xff] %vm177, %v175
    %179 = vst.msk [vmem:[#allocation2 + $0x8] sm:$0xff] %vm177, %v176
    %v180 = vld [vmem:[%s1] sm:$0xff]
    %v181 = vld [vmem:[%s1 + $0x8] sm:$0xff]
    %v184 = vrot.slane %v180, 7
    %v185 = vrot.slane %v181, 7
    %v188 = vsel %vm49, %v184, %v184
    %v189 = vsel %vm49, %v185, %v185
    %v190 = vrot.slane %v180, 1
    %v191 = vrot.slane %v181, 1
    %v194 = vsel %vm56, %v190, %v190
    %v195 = vsel %vm56, %v191, %v191
    %196 = vrot.lane.b32.xlu0 %v180, 3
    %v197 = vpop.permute.xlu0 %196
    %198 = vrot.lane.b32.xlu0 %v181, 3
    %v199 = vpop.permute.xlu0 %198
    %204 = vrot.lane.b32.xlu0 %v194, 6
    %v205 = vpop.permute.xlu0 %204
    %206 = vrot.lane.b32.xlu0 %v195, 6
    %v207 = vpop.permute.xlu0 %206
    %vm210 = vcmask 23552
    %v211 = vsel %vm210, %v188, %v197
    %v212 = vsel %vm210, %v189, %v199
    %vm213 = vcmask 48128
    %v214 = vsel %vm213, %v211, %v205
    %v215 = vsel %vm213, %v212, %v207
    %v216 = vld [vmem:[%s4] sm:$0xff]
    %v217 = vld [vmem:[%s4 + $0x8] sm:$0x1]
    %vm218 = vcmask 72704
    %v220 = vsel %vm218, %v214, 0
    %v223 = vsel %vm218, %v215, 0
    %v226 = vsel %vm49, %v217, 0
    %228 = vmatprep.subr.mxu0 0.0
    %229 = vmatpush1.msra.mxu0 0.0
    %230 = vmatprep.subr.mxu0 0.0
    %231 = vmatpush1.msra.mxu0 0.0
    %232 = vmatprep.subr.mxu0 0.0
    %233 = vmatpush1.msra.mxu0 0.0
    %234 = vmatprep.subr.mxu0 0.0
    %235 = vmatpush1.msra.mxu0 0.0
    %236 = vmatprep.subr.mxu0 0.0
    %237 = vmatpush1.msra.mxu0 0.0
    %238 = vmatprep.subr.mxu0 0.0
    %239 = vmatpush1.msra.mxu0 0.0
    %240 = vmatprep.subr.mxu0 0.0
    %241 = vmatpush1.msra.mxu0 0.0
    %242 = vmatprep.subr.mxu0 0.0
    %243 = vmatpush1.msra.mxu0 0.0
    %244 = vmatprep.subr.mxu0 0.0
    %245 = vmatpush1.msra.mxu0 0.0
    %246 = vmatprep.subr.mxu0 0.0
    %247 = vmatpush1.msra.mxu0 0.0
    %248 = vmatprep.subr.mxu0 0.0
    %249 = vmatpush1.msra.mxu0 0.0
    %250 = vmatprep.subr.mxu0 0.0
    %251 = vmatpush1.msra.mxu0 0.0
    %252 = vmatprep.subr.mxu0 0.0
    %253 = vmatpush1.msra.mxu0 0.0
    %254 = vmatprep.subr.mxu0 0.0
    %255 = vmatpush1.msra.mxu0 0.0
    %256 = vmatprep.subr.mxu0 0.0
    %257 = vmatpush1.msra.mxu0 %v226
    %258 = vmatprep.subr.mxu0 0.0
    %259 = vmatpush1.msra.mxu0 %v216
    %260 = vmatprep.subr.mxu0 0.0
    %261 = vmatpush2.msra.mxu0 0.0
    %262 = vmatprep.subr.mxu0 0.0
    %263 = vmatpush2.msra.mxu0 0.0
    %264 = vmatprep.subr.mxu0 0.0
    %265 = vmatpush2.msra.mxu0 0.0
    %266 = vmatprep.subr.mxu0 0.0
    %267 = vmatpush2.msra.mxu0 0.0
    %268 = vmatprep.subr.mxu0 0.0
    %269 = vmatpush2.msra.mxu0 0.0
    %270 = vmatprep.subr.mxu0 0.0
    %271 = vmatpush2.msra.mxu0 0.0
    %272 = vmatprep.subr.mxu0 0.0
    %273 = vmatpush2.msra.mxu0 0.0
    %274 = vmatprep.subr.mxu0 0.0
    %275 = vmatpush2.msra.mxu0 0.0
    %276 = vmatprep.subr.mxu0 0.0
    %277 = vmatpush2.msra.mxu0 0.0
    %278 = vmatprep.subr.mxu0 0.0
    %279 = vmatpush2.msra.mxu0 0.0
    %280 = vmatprep.subr.mxu0 0.0
    %281 = vmatpush2.msra.mxu0 0.0
    %282 = vmatprep.subr.mxu0 0.0
    %283 = vmatpush2.msra.mxu0 0.0
    %284 = vmatprep.subr.mxu0 0.0
    %285 = vmatpush2.msra.mxu0 0.0
    %286 = vmatprep.subr.mxu0 0.0
    %287 = vmatpush2.msra.mxu0 0.0
    %288 = vmatprep.subr.mxu0 0.0
    %289 = vmatpush2.msra.mxu0 0.0
    %290 = vmatprep.subr.mxu0 0.0
    %291 = vmatpush2.msra.mxu0 0.0
    %292 = vmatprep.mubr.f32.mxu0 0.0
    %293 = vmatmul.mubr.f32.gmra.mxu0 %v220
    %v294 = vpop.f32.mrf.mxu0
    %v295 = vadd.f32 0.0, %v294
    %v296 = vpop.f32.mrf.mxu0
    %297 = vmatprep.mubr.f32.mxu0 0.0
    %298 = vmatmul.mubr.f32.gmra.mxu0 %v223
    %v299 = vpop.f32.mrf.mxu0
    %v300 = vadd.f32 0.0, %v299
    %v301 = vpop.f32.mrf.mxu0
    %302 = vdwg.mxu0
    %v303 = vld [vmem:[%s7] sm:$0x1]
    %v305 = vlaneseq
    %v306 = vshrl.u32 %v305, 7
    %v307 = vsub.s32 0, %v306
    %v308 = vrot.slane %v303, %v307
    %v310 = vadd.f32 %v308, %v40
    %v311 = vadd.f32 %v295, %v310
    %v312 = vadd.f32 %v300, %v310
    %313 = vst.msk [vmem:[#allocation4] sm:$0xff] %vm177, %v311
    %314 = vst.msk [vmem:[#allocation4 + $0x8] sm:$0xff] %vm177, %v312
    %v315 = vld [vmem:[%s2] sm:$0xff]
    %v316 = vld [vmem:[%s2 + $0x8] sm:$0xff]
    %v319 = vrot.slane %v315, 7
    %v320 = vrot.slane %v316, 7
    %v323 = vsel %vm49, %v319, %v319
    %v324 = vsel %vm49, %v320, %v320
    %v325 = vrot.slane %v315, 1
    %v326 = vrot.slane %v316, 1
    %v329 = vsel %vm56, %v325, %v325
    %v330 = vsel %vm56, %v326, %v326
    %331 = vrot.lane.b32.xlu0 %v315, 5
    %v332 = vpop.permute.xlu0 %331
    %333 = vrot.lane.b32.xlu0 %v316, 5
    %v334 = vpop.permute.xlu0 %333
    %339 = vrot.lane.b32.xlu0 %v329, 10
    %v340 = vpop.permute.xlu0 %339
    %341 = vrot.lane.b32.xlu0 %v330, 10
    %v342 = vpop.permute.xlu0 %341
    %vm345 = vcmask 39936
    %v346 = vsel %vm345, %v323, %v332
    %v347 = vsel %vm345, %v324, %v334
    %vm348 = vcmask 80896
    %v349 = vsel %vm348, %v346, %v340
    %v350 = vsel %vm348, %v347, %v342
    %v351 = vld [vmem:[%s5] sm:$0xff]
    %v352 = vld [vmem:[%s5 + $0x8] sm:$0x7f]
    %vm353 = vcmask 121856
    %v355 = vsel %vm353, %v349, 0
    %v358 = vsel %vm353, %v350, 0
    %v361 = vsel %vm56, %v352, 0
    %363 = vmatprep.subr.mxu0 0.0
    %364 = vmatpush1.msra.mxu0 0.0
    %365 = vmatprep.subr.mxu0 0.0
    %366 = vmatpush1.msra.mxu0 0.0
    %367 = vmatprep.subr.mxu0 0.0
    %368 = vmatpush1.msra.mxu0 0.0
    %369 = vmatprep.subr.mxu0 0.0
    %370 = vmatpush1.msra.mxu0 0.0
    %371 = vmatprep.subr.mxu0 0.0
    %372 = vmatpush1.msra.mxu0 0.0
    %373 = vmatprep.subr.mxu0 0.0
    %374 = vmatpush1.msra.mxu0 0.0
    %375 = vmatprep.subr.mxu0 0.0
    %376 = vmatpush1.msra.mxu0 0.0
    %377 = vmatprep.subr.mxu0 0.0
    %378 = vmatpush1.msra.mxu0 0.0
    %379 = vmatprep.subr.mxu0 0.0
    %380 = vmatpush1.msra.mxu0 0.0
    %381 = vmatprep.subr.mxu0 0.0
    %382 = vmatpush1.msra.mxu0 0.0
    %383 = vmatprep.subr.mxu0 0.0
    %384 = vmatpush1.msra.mxu0 0.0
    %385 = vmatprep.subr.mxu0 0.0
    %386 = vmatpush1.msra.mxu0 0.0
    %387 = vmatprep.subr.mxu0 0.0
    %388 = vmatpush1.msra.mxu0 0.0
    %389 = vmatprep.subr.mxu0 0.0
    %390 = vmatpush1.msra.mxu0 0.0
    %391 = vmatprep.subr.mxu0 0.0
    %392 = vmatpush1.msra.mxu0 %v361
    %393 = vmatprep.subr.mxu0 0.0
    %394 = vmatpush1.msra.mxu0 %v351
    %395 = vmatprep.subr.mxu0 0.0
    %396 = vmatpush2.msra.mxu0 0.0
    %397 = vmatprep.subr.mxu0 0.0
    %398 = vmatpush2.msra.mxu0 0.0
    %399 = vmatprep.subr.mxu0 0.0
    %400 = vmatpush2.msra.mxu0 0.0
    %401 = vmatprep.subr.mxu0 0.0
    %402 = vmatpush2.msra.mxu0 0.0
    %403 = vmatprep.subr.mxu0 0.0
    %404 = vmatpush2.msra.mxu0 0.0
    %405 = vmatprep.subr.mxu0 0.0
    %406 = vmatpush2.msra.mxu0 0.0
    %407 = vmatprep.subr.mxu0 0.0
    %408 = vmatpush2.msra.mxu0 0.0
    %409 = vmatprep.subr.mxu0 0.0
    %410 = vmatpush2.msra.mxu0 0.0
    %411 = vmatprep.subr.mxu0 0.0
    %412 = vmatpush2.msra.mxu0 0.0
    %413 = vmatprep.subr.mxu0 0.0
    %414 = vmatpush2.msra.mxu0 0.0
    %415 = vmatprep.subr.mxu0 0.0
    %416 = vmatpush2.msra.mxu0 0.0
    %417 = vmatprep.subr.mxu0 0.0
    %418 = vmatpush2.msra.mxu0 0.0
    %419 = vmatprep.subr.mxu0 0.0
    %420 = vmatpush2.msra.mxu0 0.0
    %421 = vmatprep.subr.mxu0 0.0
    %422 = vmatpush2.msra.mxu0 0.0
    %423 = vmatprep.subr.mxu0 0.0
    %424 = vmatpush2.msra.mxu0 0.0
    %425 = vmatprep.subr.mxu0 0.0
    %426 = vmatpush2.msra.mxu0 0.0
    %427 = vmatprep.mubr.f32.mxu0 0.0
    %428 = vmatmul.mubr.f32.gmra.mxu0 %v355
    %v429 = vpop.f32.mrf.mxu0
    %v430 = vadd.f32 0.0, %v429
    %v431 = vpop.f32.mrf.mxu0
    %432 = vmatprep.mubr.f32.mxu0 0.0
    %433 = vmatmul.mubr.f32.gmra.mxu0 %v358
    %v434 = vpop.f32.mrf.mxu0
    %v435 = vadd.f32 0.0, %v434
    %v436 = vpop.f32.mrf.mxu0
    %437 = vdwg.mxu0
    %v438 = vld [vmem:[%s8] sm:$0x1]
    %v440 = vlaneseq
    %v441 = vshrl.u32 %v440, 7
    %v442 = vsub.s32 0, %v441
    %v443 = vrot.slane %v438, %v442
    %v445 = vadd.f32 %v443, %v40
    %v446 = vadd.f32 %v430, %v445
    %v447 = vadd.f32 %v435, %v445
    %448 = vst.msk [vmem:[#allocation6] sm:$0xff] %vm177, %v446
    %449 = vst.msk [vmem:[#allocation6 + $0x8] sm:$0xff] %vm177, %v447
    // Predicated region
    $region42: #{data_embedding_forward.1} parent=1 // pred_check
      _
    $region43: #{data_embedding_forward.1} parent=1 // pred_check_branch
      %451 = sbr.rel (0) target = $region45
    $region44: #{data_embedding_forward.1} parent=1 // pred_region
      %s453 = ssub.s32 256, 256
      %454 = vsyncadd [#allocation3], %s453
      %s455 = sshll.u32 [#allocation2], 4
      %s456 = int_to_ptr.vmem [resolvable:$true] %s455
      %461 = dma.vmem_to_hbm [thread:$0]  %s456, 256, %s10, [#allocation3], 128, 128, 8
    $region45: #{data_embedding_forward.1} parent=1 // pred_fallthru
      _
    // Predicated region
    $region46: #{data_embedding_forward.1} parent=1 // pred_check
      _
    $region47: #{data_embedding_forward.1} parent=1 // pred_check_branch
      %463 = sbr.rel (0) target = $region49
    $region48: #{data_embedding_forward.1} parent=1 // pred_region
      %s465 = ssub.s32 256, 256
      %466 = vsyncadd [#allocation5], %s465
      %s467 = sshll.u32 [#allocation4], 4
      %s468 = int_to_ptr.vmem [resolvable:$true] %s467
      %473 = dma.vmem_to_hbm [thread:$0]  %s468, 256, %s11, [#allocation5], 128, 128, 8
    $region49: #{data_embedding_forward.1} parent=1 // pred_fallthru
      _
    // Predicated region
    $region50: #{data_embedding_forward.1} parent=1 // pred_check
      _
    $region51: #{data_embedding_forward.1} parent=1 // pred_check_branch
      %475 = sbr.rel (0) target = $region53
    $region52: #{data_embedding_forward.1} parent=1 // pred_region
      %s477 = ssub.s32 256, 256
      %478 = vsyncadd [#allocation5], %s477
      %s479 = sshll.u32 [#allocation6], 4
      %s480 = int_to_ptr.vmem [resolvable:$true] %s479
      %485 = dma.vmem_to_hbm [thread:$0]  %s480, 256, %s12, [#allocation5], 128, 128, 8
    $region53: #{data_embedding_forward.1} parent=1 // pred_fallthru
      _
    // Predicated region
    $region54: #{data_embedding_forward.1} parent=1 // pred_check
      _
    $region55: #{data_embedding_forward.1} parent=1 // pred_check_branch
      %487 = sbr.rel (0) target = $region57
    $region56: #{data_embedding_forward.1} parent=1 // pred_region
      %488 = dma.done [#allocation3], 256
    $region57: #{data_embedding_forward.1} parent=1 // pred_fallthru
      _
    // Predicated region
    $region58: #{data_embedding_forward.1} parent=1 // pred_check
      _
    $region59: #{data_embedding_forward.1} parent=1 // pred_check_branch
      %490 = sbr.rel (0) target = $region61
    $region60: #{data_embedding_forward.1} parent=1 // pred_region
      %491 = dma.done [#allocation5], 256
    $region61: #{data_embedding_forward.1} parent=1 // pred_fallthru
      _
    // Predicated region
    $region62: #{data_embedding_forward.1} parent=1 // pred_check
      _
    $region63: #{data_embedding_forward.1} parent=1 // pred_check_branch
      %493 = sbr.rel (0) target = $region65
    $region64: #{data_embedding_forward.1} parent=1 // pred_region
      %494 = dma.done [#allocation5], 256
    $region65: #{data_embedding_forward.1} parent=1 // pred_fallthru
      _
    %495 = vsyncpa [#allocation3], 1
    %496 = vsyncpa [#allocation5], 1

</llo_original>
